<compile_context>
chip_gen: v5e
topology: v5e:2x2
jax: 0.10.0
libtpu: 0.0.40
codegen_flags: <defaults>
</compile_context>

<pallas_src>
import functools

import jax
import jax.numpy as jnp
from jax.experimental import pallas as pl
from jax.experimental.pallas import tpu as pltpu


def _gcn_fused_kernel(x_ref, Abd_ref, L_ref, b_ref, o_ref, *, order, n_support):
    """Fused diffusion + concat + 1x1-conv MLP for one lane tile.

    x_ref  : (C*V, Mt)         activation slab, M = N*L lane-dense (compute dtype)
    Abd_ref: (S, C*V, C*V)     kron(I_C, A_s^T) per support (compute dtype)
    L_ref  : (K, V*c_out, C*V) per-slot lifted 1x1-conv weights (compute dtype)
    b_ref  : (V*c_out, 1)      bias tiled over nodes, f32
    o_ref  : (V*c_out, Mt)     output slab
    """
    x = x_ref[...]
    # Slot 0 of torch.cat is the identity term -> initializes the accumulator
    # (no zeroing pass, no copy of x into scratch).
    acc = jnp.dot(L_ref[0], x, preferred_element_type=jnp.float32)

    slot = 1
    for s in range(n_support):
        A = Abd_ref[s]                                     # (C*V, C*V)
        prev = x
        for _ in range(order):
            # One fat MXU matmul per (support, hop); intermediate stays in VMEM.
            cur = jnp.dot(A, prev, preferred_element_type=jnp.float32)
            cur = cur.astype(x.dtype)
            # Fuse this slot's MLP contribution immediately (removes the K*C*V
            # concat scratch entirely).
            acc = acc + jnp.dot(L_ref[slot], cur, preferred_element_type=jnp.float32)
            prev = cur
            slot += 1

    # Bias added exactly once (single broadcast), lane-dense store.
    o_ref[...] = (acc + b_ref[...]).astype(o_ref.dtype)
    # TODO(synk): F.dropout is identity in eval mode; training-mode dropout
    # would use pltpu.prng_seed / pltpu.prng_random_bits here.


def _choose_m_tiling(m, per_lane_bytes, budget_bytes=24 << 20):
    """Pad M to a lane-dense 128-multiple and pick a VMEM-budgeted tile.

    Returns (mt, m_pad) with mt % 128 == 0, mt | m_pad, and a grid of at least
    2 whenever the padded M allows it (v7x megacore + pipelining overlap).
    """
    m128 = max(128, ((m + 127) // 128) * 128)
    cap = max(128, min(1024, (budget_bytes // max(per_lane_bytes, 1)) // 128 * 128))
    mt = min(cap, m128)
    if m128 >= 256 and 2 * mt > m128:
        mt = max(128, (m128 // 2) // 128 * 128)
    m_pad = ((m128 + mt - 1) // mt) * mt
    return mt, m_pad


def gcn_forward_cm(x_cm, supports, W, b, order=2,
                   compute_dtype=jnp.bfloat16, out_dtype=None):
    """Fused STGCL gcn on channel-major activations.

    x_cm: (C, V, M) with M = N*L; supports: list of (V, V);
    W: (c_out, (order*len(supports)+1)*C); b: (c_out,).
    Returns (V, c_out, M).  Keeping this layout across consecutive gcn layers
    avoids the HBM relayout transposes entirely.
    """
    C, V, M = x_cm.shape
    S = len(supports)
    K = order * S + 1
    c_out = W.shape[0]
    CV = C * V
    VO = V * c_out
    out_dtype = out_dtype or x_cm.dtype
    cb = jnp.dtype(compute_dtype).itemsize
    ob = jnp.dtype(out_dtype).itemsize

    # ---- host-side (tiny) constant prep: lifted weights -------------------
    # Diffusion as block-diagonal matmul on the flat (C*V, Mt) slab:
    #   A_bd[(c*V+w),(c'*V+v)] = delta(c,c') * A^T[w,v]
    eye_c = jnp.eye(C, dtype=jnp.float32)
    Abd = jnp.stack([jnp.kron(eye_c, a.T.astype(jnp.float32)) for a in supports], 0)
    # 1x1-conv weight lifted per diffusion slot k:
    #   L[k, (v*c_out+o), (c*V+w)] = W[o, k*C+c] * delta(v, w)
    eye_v = jnp.eye(V, dtype=jnp.float32)
    Wk = W.astype(jnp.float32).reshape(c_out, K, C)
    L = jnp.einsum('okc,vw->kvocw', Wk, eye_v).reshape(K, VO, CV)
    b_t = jnp.tile(b.astype(jnp.float32).reshape(1, c_out), (V, 1)).reshape(VO, 1)

    # ---- tiling: lane-dense, VMEM-budgeted, grid >= 2 when possible --------
    # Mt-scaled VMEM per lane column: double-buffered in/out blocks + the
    # compiler-held diffusion/accumulator temporaries.
    per_lane = 2 * CV * cb + 2 * VO * ob + (2 * CV * 4 + VO * 4)
    mt, m_pad = _choose_m_tiling(M, per_lane)
    grid = m_pad // mt

    xc = x_cm.reshape(CV, M).astype(compute_dtype)
    if m_pad != M:
        xc = jnp.pad(xc, ((0, 0), (0, m_pad - M)))

    # Explicit scoped-VMEM budget (v5e default is only 16 MiB): blocks + weights.
    vmem_fixed = (S * CV * CV + K * VO * CV) * cb + VO * 4
    vmem_needed = per_lane * mt + 2 * vmem_fixed
    vmem_limit = int(min(120 << 20, max(32 << 20, 2 * vmem_needed)))

    out_flat = pl.pallas_call(
        functools.partial(_gcn_fused_kernel, order=order, n_support=S),
        out_shape=jax.ShapeDtypeStruct((VO, m_pad), out_dtype),
        grid=(grid,),
        in_specs=[
            pl.BlockSpec((CV, mt), lambda i: (0, i)),
            pl.BlockSpec((S, CV, CV), lambda i: (0, 0, 0)),
            pl.BlockSpec((K, VO, CV), lambda i: (0, 0, 0)),
            pl.BlockSpec((VO, 1), lambda i: (0, 0)),
        ],
        out_specs=pl.BlockSpec((VO, mt), lambda i: (0, i)),
        compiler_params=pltpu.CompilerParams(
            dimension_semantics=("parallel",),
            vmem_limit_bytes=vmem_limit,
        ),
    )(xc, Abd.astype(compute_dtype), L.astype(compute_dtype), b_t)

    return out_flat[:, :M].reshape(V, c_out, M)


def gcn_forward(x, supports, W, b, order=2, compute_dtype=jnp.bfloat16):
    """PyTorch-interface wrapper: x (N, C, V, L) -> (N, c_out, V, L).

    NOTE: the two transposes below are pure layout plumbing for interface
    parity; when chaining STGCL layers, call `gcn_forward_cm` directly on the
    channel-major (C, V, N*L) layout and skip them.
    """
    N, C, V, L_t = x.shape
    c_out = W.shape[0]
    x_cm = jnp.transpose(x, (1, 2, 0, 3)).reshape(C, V, N * L_t)
    out_cm = gcn_forward_cm(x_cm, supports, W, b, order=order,
                            compute_dtype=compute_dtype, out_dtype=x.dtype)
    return out_cm.reshape(V, c_out, N, L_t).transpose(2, 1, 0, 3)


def gcn_reference(x, supports, W, b, order=2):
    """Pure-JAX reference mirroring the PyTorch module (eval mode)."""
    outs = [x]
    for A in supports:
        x1 = jnp.einsum('ncvl,vw->ncwl', x, A)
        outs.append(x1)
        for _ in range(2, order + 1):
            x1 = jnp.einsum('ncvl,vw->ncwl', x1, A)
            outs.append(x1)
    h = jnp.concatenate(outs, axis=1)  # (N, K*C, V, L)
    return jnp.einsum('oc,ncvl->novl', W, h) + b[None, :, None, None]


if __name__ == "__main__":
    key = jax.random.PRNGKey(0)
    N, C_IN, V, L = 2, 4, 16, 8              # batch, channels, nodes, time
    SUPPORT_LEN, ORDER, C_OUT = 3, 2, 8
    C_TOTAL = (ORDER * SUPPORT_LEN + 1) * C_IN   # = 28

    k_x, k_s, k_w, k_b = jax.random.split(key, 4)
    x = jax.random.normal(k_x, (N, C_IN, V, L), dtype=jnp.float32)
    supports = [
        0.1 * jax.random.normal(k, (V, V), dtype=jnp.float32)
        for k in jax.random.split(k_s, SUPPORT_LEN)
    ]
    W = 0.1 * jax.random.normal(k_w, (C_OUT, C_TOTAL), dtype=jnp.float32)
    b = 0.01 * jax.random.normal(k_b, (C_OUT,), dtype=jnp.float32)

    ref = gcn_reference(x, supports, W, b, order=ORDER)

    # Strict f32 path (matches reference to 1e-4).
    out_f32 = jax.block_until_ready(
        gcn_forward(x, supports, W, b, order=ORDER, compute_dtype=jnp.float32))
    assert out_f32.shape == (N, C_OUT, V, L), out_f32.shape
    assert jnp.allclose(out_f32, ref, atol=1e-4, rtol=1e-4), float(
        jnp.max(jnp.abs(out_f32 - ref)))

    # Default fast bf16 path (bf16 MXU operands, f32 accumulation).
    out_bf16 = jax.block_until_ready(
        gcn_forward(x, supports, W, b, order=ORDER, compute_dtype=jnp.bfloat16))
    assert out_bf16.shape == (N, C_OUT, V, L), out_bf16.shape
    assert jnp.allclose(out_bf16, ref, atol=5e-2, rtol=5e-2), float(
        jnp.max(jnp.abs(out_bf16 - ref)))

    print("KERNEL_OK")
</pallas_src>

<mosaic_0001>
module attributes {stable_mosaic.version = 11 : i64} {
  func.func @_gcn_fused_kernel(%arg0: i32, %arg1: memref<64x128xf32, #tpu.memory_space<vmem>>, %arg2: memref<3x64x64xf32, #tpu.memory_space<vmem>>, %arg3: memref<7x128x64xf32, #tpu.memory_space<vmem>>, %arg4: memref<128x1xf32, #tpu.memory_space<vmem>>, %arg5: memref<128x128xf32, #tpu.memory_space<vmem>>) attributes {dimension_semantics = [#tpu.dimension_semantics<parallel>], iteration_bounds = array<i64: 1>, scalar_prefetch = 0 : i64, scratch_operands = 0 : i64, tpu.core_type = #tpu.core_type<tc>, window_params = [{transform_indices = @transform_0, window_bounds = array<i64: 64, 128>}, {pipeline_mode = #tpu.pipeline_mode<synchronous>, transform_indices = @transform_1, window_bounds = array<i64: 3, 64, 64>}, {pipeline_mode = #tpu.pipeline_mode<synchronous>, transform_indices = @transform_2, window_bounds = array<i64: 7, 128, 64>}, {pipeline_mode = #tpu.pipeline_mode<synchronous>, transform_indices = @transform_3, window_bounds = array<i64: 128, 1>}, {transform_indices = @transform_4, window_bounds = array<i64: 128, 128>}]} {
    %c0 = arith.constant 0 : index
    %c0_0 = arith.constant 0 : index
    %0 = vector.load %arg1[%c0, %c0_0] : memref<64x128xf32, #tpu.memory_space<vmem>>, vector<64x128xf32>
    %c0_1 = arith.constant 0 : index
    %c0_2 = arith.constant 0 : index
    %c0_3 = arith.constant 0 : index
    %1 = vector.load %arg3[%c0_1, %c0_2, %c0_3] : memref<7x128x64xf32, #tpu.memory_space<vmem>>, vector<1x128x64xf32>
    %2 = vector.shape_cast %1 : vector<1x128x64xf32> to vector<128x64xf32>
    %cst = arith.constant dense<0.000000e+00> : vector<128x128xf32>
    %3 = tpu.matmul %2, %0, %cst {dimension_numbers = #tpu.dot_dimension_numbers<[1], [0], [0], [1], [0, 0, 1, 1], [], []>} : vector<128x64xf32>, vector<64x128xf32>, vector<128x128xf32> -> vector<128x128xf32>
    %c0_4 = arith.constant 0 : index
    %c0_5 = arith.constant 0 : index
    %c0_6 = arith.constant 0 : index
    %4 = vector.load %arg2[%c0_4, %c0_5, %c0_6] : memref<3x64x64xf32, #tpu.memory_space<vmem>>, vector<1x64x64xf32>
    %5 = vector.shape_cast %4 : vector<1x64x64xf32> to vector<64x64xf32>
    %cst_7 = arith.constant dense<0.000000e+00> : vector<64x128xf32>
    %6 = tpu.matmul %5, %0, %cst_7 {dimension_numbers = #tpu.dot_dimension_numbers<[1], [0], [0], [1], [0, 0, 1, 1], [], []>} : vector<64x64xf32>, vector<64x128xf32>, vector<64x128xf32> -> vector<64x128xf32>
    %c1 = arith.constant 1 : index
    %c0_8 = arith.constant 0 : index
    %c0_9 = arith.constant 0 : index
    %7 = vector.load %arg3[%c1, %c0_8, %c0_9] : memref<7x128x64xf32, #tpu.memory_space<vmem>>, vector<1x128x64xf32>
    %8 = vector.shape_cast %7 : vector<1x128x64xf32> to vector<128x64xf32>
    %cst_10 = arith.constant dense<0.000000e+00> : vector<128x128xf32>
    %9 = tpu.matmul %8, %6, %cst_10 {dimension_numbers = #tpu.dot_dimension_numbers<[1], [0], [0], [1], [0, 0, 1, 1], [], []>} : vector<128x64xf32>, vector<64x128xf32>, vector<128x128xf32> -> vector<128x128xf32>
    %10 = arith.addf %3, %9 : vector<128x128xf32>
    %cst_11 = arith.constant dense<0.000000e+00> : vector<64x128xf32>
    %11 = tpu.matmul %5, %6, %cst_11 {dimension_numbers = #tpu.dot_dimension_numbers<[1], [0], [0], [1], [0, 0, 1, 1], [], []>} : vector<64x64xf32>, vector<64x128xf32>, vector<64x128xf32> -> vector<64x128xf32>
    %c2 = arith.constant 2 : index
    %c0_12 = arith.constant 0 : index
    %c0_13 = arith.constant 0 : index
    %12 = vector.load %arg3[%c2, %c0_12, %c0_13] : memref<7x128x64xf32, #tpu.memory_space<vmem>>, vector<1x128x64xf32>
    %13 = vector.shape_cast %12 : vector<1x128x64xf32> to vector<128x64xf32>
    %cst_14 = arith.constant dense<0.000000e+00> : vector<128x128xf32>
    %14 = tpu.matmul %13, %11, %cst_14 {dimension_numbers = #tpu.dot_dimension_numbers<[1], [0], [0], [1], [0, 0, 1, 1], [], []>} : vector<128x64xf32>, vector<64x128xf32>, vector<128x128xf32> -> vector<128x128xf32>
    %15 = arith.addf %10, %14 : vector<128x128xf32>
    %c1_15 = arith.constant 1 : index
    %c0_16 = arith.constant 0 : index
    %c0_17 = arith.constant 0 : index
    %16 = vector.load %arg2[%c1_15, %c0_16, %c0_17] : memref<3x64x64xf32, #tpu.memory_space<vmem>>, vector<1x64x64xf32>
    %17 = vector.shape_cast %16 : vector<1x64x64xf32> to vector<64x64xf32>
    %cst_18 = arith.constant dense<0.000000e+00> : vector<64x128xf32>
    %18 = tpu.matmul %17, %0, %cst_18 {dimension_numbers = #tpu.dot_dimension_numbers<[1], [0], [0], [1], [0, 0, 1, 1], [], []>} : vector<64x64xf32>, vector<64x128xf32>, vector<64x128xf32> -> vector<64x128xf32>
    %c3 = arith.constant 3 : index
    %c0_19 = arith.constant 0 : index
    %c0_20 = arith.constant 0 : index
    %19 = vector.load %arg3[%c3, %c0_19, %c0_20] : memref<7x128x64xf32, #tpu.memory_space<vmem>>, vector<1x128x64xf32>
    %20 = vector.shape_cast %19 : vector<1x128x64xf32> to vector<128x64xf32>
    %cst_21 = arith.constant dense<0.000000e+00> : vector<128x128xf32>
    %21 = tpu.matmul %20, %18, %cst_21 {dimension_numbers = #tpu.dot_dimension_numbers<[1], [0], [0], [1], [0, 0, 1, 1], [], []>} : vector<128x64xf32>, vector<64x128xf32>, vector<128x128xf32> -> vector<128x128xf32>
    %22 = arith.addf %15, %21 : vector<128x128xf32>
    %cst_22 = arith.constant dense<0.000000e+00> : vector<64x128xf32>
    %23 = tpu.matmul %17, %18, %cst_22 {dimension_numbers = #tpu.dot_dimension_numbers<[1], [0], [0], [1], [0, 0, 1, 1], [], []>} : vector<64x64xf32>, vector<64x128xf32>, vector<64x128xf32> -> vector<64x128xf32>
    %c4 = arith.constant 4 : index
    %c0_23 = arith.constant 0 : index
    %c0_24 = arith.constant 0 : index
    %24 = vector.load %arg3[%c4, %c0_23, %c0_24] : memref<7x128x64xf32, #tpu.memory_space<vmem>>, vector<1x128x64xf32>
    %25 = vector.shape_cast %24 : vector<1x128x64xf32> to vector<128x64xf32>
    %cst_25 = arith.constant dense<0.000000e+00> : vector<128x128xf32>
    %26 = tpu.matmul %25, %23, %cst_25 {dimension_numbers = #tpu.dot_dimension_numbers<[1], [0], [0], [1], [0, 0, 1, 1], [], []>} : vector<128x64xf32>, vector<64x128xf32>, vector<128x128xf32> -> vector<128x128xf32>
    %27 = arith.addf %22, %26 : vector<128x128xf32>
    %c2_26 = arith.constant 2 : index
    %c0_27 = arith.constant 0 : index
    %c0_28 = arith.constant 0 : index
    %28 = vector.load %arg2[%c2_26, %c0_27, %c0_28] : memref<3x64x64xf32, #tpu.memory_space<vmem>>, vector<1x64x64xf32>
    %29 = vector.shape_cast %28 : vector<1x64x64xf32> to vector<64x64xf32>
    %cst_29 = arith.constant dense<0.000000e+00> : vector<64x128xf32>
    %30 = tpu.matmul %29, %0, %cst_29 {dimension_numbers = #tpu.dot_dimension_numbers<[1], [0], [0], [1], [0, 0, 1, 1], [], []>} : vector<64x64xf32>, vector<64x128xf32>, vector<64x128xf32> -> vector<64x128xf32>
    %c5 = arith.constant 5 : index
    %c0_30 = arith.constant 0 : index
    %c0_31 = arith.constant 0 : index
    %31 = vector.load %arg3[%c5, %c0_30, %c0_31] : memref<7x128x64xf32, #tpu.memory_space<vmem>>, vector<1x128x64xf32>
    %32 = vector.shape_cast %31 : vector<1x128x64xf32> to vector<128x64xf32>
    %cst_32 = arith.constant dense<0.000000e+00> : vector<128x128xf32>
    %33 = tpu.matmul %32, %30, %cst_32 {dimension_numbers = #tpu.dot_dimension_numbers<[1], [0], [0], [1], [0, 0, 1, 1], [], []>} : vector<128x64xf32>, vector<64x128xf32>, vector<128x128xf32> -> vector<128x128xf32>
    %34 = arith.addf %27, %33 : vector<128x128xf32>
    %cst_33 = arith.constant dense<0.000000e+00> : vector<64x128xf32>
    %35 = tpu.matmul %29, %30, %cst_33 {dimension_numbers = #tpu.dot_dimension_numbers<[1], [0], [0], [1], [0, 0, 1, 1], [], []>} : vector<64x64xf32>, vector<64x128xf32>, vector<64x128xf32> -> vector<64x128xf32>
    %c6 = arith.constant 6 : index
    %c0_34 = arith.constant 0 : index
    %c0_35 = arith.constant 0 : index
    %36 = vector.load %arg3[%c6, %c0_34, %c0_35] : memref<7x128x64xf32, #tpu.memory_space<vmem>>, vector<1x128x64xf32>
    %37 = vector.shape_cast %36 : vector<1x128x64xf32> to vector<128x64xf32>
    %cst_36 = arith.constant dense<0.000000e+00> : vector<128x128xf32>
    %38 = tpu.matmul %37, %35, %cst_36 {dimension_numbers = #tpu.dot_dimension_numbers<[1], [0], [0], [1], [0, 0, 1, 1], [], []>} : vector<128x64xf32>, vector<64x128xf32>, vector<128x128xf32> -> vector<128x128xf32>
    %39 = arith.addf %34, %38 : vector<128x128xf32>
    %c0_37 = arith.constant 0 : index
    %c0_38 = arith.constant 0 : index
    %40 = vector.load %arg4[%c0_37, %c0_38] : memref<128x1xf32, #tpu.memory_space<vmem>>, vector<128x1xf32>
    %41 = vector.broadcast %40 : vector<128x1xf32> to vector<128x128xf32>
    %42 = arith.addf %39, %41 : vector<128x128xf32>
    %c0_39 = arith.constant 0 : index
    %c0_40 = arith.constant 0 : index
    %43 = vector.load %arg5[%c0_39, %c0_40] : memref<128x128xf32, #tpu.memory_space<vmem>>, vector<128x128xf32>
    tpu.vector_store %arg5[%c0_39, %c0_40], %42 {strides = array<i32>} : memref<128x128xf32, #tpu.memory_space<vmem>>, vector<128x128xf32>,
    return
  }
  func.func @transform_0(%arg0: i32) -> (i32, i32) {
    %c0_i32 = arith.constant 0 : i32
    %c0_i32_0 = arith.constant 0 : i32
    return %c0_i32, %arg0 : i32, i32
  }
  func.func @transform_1(%arg0: i32) -> (i32, i32, i32) {
    %c0_i32 = arith.constant 0 : i32
    %c0_i32_0 = arith.constant 0 : i32
    %c0_i32_1 = arith.constant 0 : i32
    %c0_i32_2 = arith.constant 0 : i32
    return %c0_i32, %c0_i32_0, %c0_i32_1 : i32, i32, i32
  }
  func.func @transform_2(%arg0: i32) -> (i32, i32, i32) {
    %c0_i32 = arith.constant 0 : i32
    %c0_i32_0 = arith.constant 0 : i32
    %c0_i32_1 = arith.constant 0 : i32
    %c0_i32_2 = arith.constant 0 : i32
    return %c0_i32, %c0_i32_0, %c0_i32_1 : i32, i32, i32
  }
  func.func @transform_3(%arg0: i32) -> (i32, i32) {
    %c0_i32 = arith.constant 0 : i32
    %c0_i32_0 = arith.constant 0 : i32
    %c0_i32_1 = arith.constant 0 : i32
    return %c0_i32, %c0_i32_0 : i32, i32
  }
  func.func @transform_4(%arg0: i32) -> (i32, i32) {
    %c0_i32 = arith.constant 0 : i32
    %c0_i32_0 = arith.constant 0 : i32
    return %c0_i32, %arg0 : i32, i32
  }
}

</mosaic_0001>

<llo_original>
// kernel: tpu_custom_call.1
$region0: #{tpu_custom_call.1}
  #allocation0 [shape = 'u32[]', space=smem, size = 0x4, offset = 0x4, fixed_abs, tag = 'smem constant byte address 0x4 - core index']
  #allocation1 [shape = 'u32[72,128]{1,0:T(1,128)}', space=vmem, size = 0x9000, scoped, tag = 'internal scratch']
  %s0 = inlined_call_operand.vmem [shape: f32[64,128], index: 0, kind: input, shape index: {}]
  %s1 = inlined_call_operand.vmem [shape: f32[3,64,64], index: 1, kind: input, shape index: {}]
  %s2 = inlined_call_operand.vmem [shape: f32[7,128,64], index: 2, kind: input, shape index: {}]
  %s3 = inlined_call_operand.vmem [shape: f32[128,1], index: 3, kind: input, shape index: {}]
  %s4 = inlined_call_operand.hbm [shape: f32[128,128], index: 4, kind: output, shape index: {}]
  %s5 = sld [smem:[#allocation0]]
  $region26: #{tpu_custom_call.1} parent=0
    _
  %s7 = ssub.s32 1, %s5
  %s8 = scalar_select 0, %s7, %s5
  $region1: #{tpu_custom_call.1} parent=0
    #allocation2 [shape = 'u8[65536]{0}', space=vmem, size = 0x10000, scoped, tag = 'output window, operand 0, single buffered']
    #allocation3 [shape = 's32[1]{0}', space=sflag, size = 0x4, scoped, tag = 'scoped memory for tpu_custom_call.1']
    %9 = vsyncpa [#allocation3], 0
    // Predicated region
    $region2: #{tpu_custom_call.1} parent=1 // pred_check
      _
    $region3: #{tpu_custom_call.1} parent=1 // pred_check_branch
      %11 = sbr.rel (0) target = $region5
    $region4: #{tpu_custom_call.1} parent=1 // pred_region
      _
    $region5: #{tpu_custom_call.1} parent=1 // pred_fallthru
      _
    // Predicated region
    $region6: #{tpu_custom_call.1} parent=1 // pred_check
      _
    $region7: #{tpu_custom_call.1} parent=1 // pred_check_branch
      %13 = sbr.rel (0) target = $region9
    $region8: #{tpu_custom_call.1} parent=1 // pred_region
      _
    $region9: #{tpu_custom_call.1} parent=1 // pred_fallthru
      _
    // Predicated region
    $region10: #{tpu_custom_call.1} parent=1 // pred_check
      _
    $region11: #{tpu_custom_call.1} parent=1 // pred_check_branch
      %15 = sbr.rel (0) target = $region13
    $region12: #{tpu_custom_call.1} parent=1 // pred_region
      _
    $region13: #{tpu_custom_call.1} parent=1 // pred_fallthru
      _
    // Predicated region
    $region14: #{tpu_custom_call.1} parent=1 // pred_check
      _
    $region15: #{tpu_custom_call.1} parent=1 // pred_check_branch
      %17 = sbr.rel (0) target = $region17
    $region16: #{tpu_custom_call.1} parent=1 // pred_region
      _
    $region17: #{tpu_custom_call.1} parent=1 // pred_fallthru
      _
    %v18 = vld [vmem:[%s0] sm:$0xff]
    %v19 = vld [vmem:[%s0 + $0x8] sm:$0xff]
    %v20 = vld [vmem:[%s0 + $0x10] sm:$0xff]
    %v21 = vld [vmem:[%s0 + $0x18] sm:$0xff]
    %v22 = vld [vmem:[%s0 + $0x20] sm:$0xff]
    %v23 = vld [vmem:[%s0 + $0x28] sm:$0xff]
    %v24 = vld [vmem:[%s0 + $0x30] sm:$0xff]
    %v25 = vld [vmem:[%s0 + $0x38] sm:$0xff]
    %v26 = vld [vmem:[%s2] sm:$0xff]
    %v27 = vld [vmem:[%s2 + $0x8] sm:$0xff]
    %v28 = vld [vmem:[%s2 + $0x10] sm:$0xff]
    %v29 = vld [vmem:[%s2 + $0x18] sm:$0xff]
    %v30 = vld [vmem:[%s2 + $0x20] sm:$0xff]
    %v31 = vld [vmem:[%s2 + $0x28] sm:$0xff]
    %v32 = vld [vmem:[%s2 + $0x30] sm:$0xff]
    %v33 = vld [vmem:[%s2 + $0x38] sm:$0xff]
    %v34 = vld [vmem:[%s2 + $0x40] sm:$0xff]
    %v35 = vld [vmem:[%s2 + $0x48] sm:$0xff]
    %v36 = vld [vmem:[%s2 + $0x50] sm:$0xff]
    %v37 = vld [vmem:[%s2 + $0x58] sm:$0xff]
    %v38 = vld [vmem:[%s2 + $0x60] sm:$0xff]
    %v39 = vld [vmem:[%s2 + $0x68] sm:$0xff]
    %v40 = vld [vmem:[%s2 + $0x70] sm:$0xff]
    %v41 = vld [vmem:[%s2 + $0x78] sm:$0xff]
    %v42 = vld [vmem:[%s1] sm:$0xff]
    %v43 = vld [vmem:[%s1 + $0x8] sm:$0xff]
    %v44 = vld [vmem:[%s1 + $0x10] sm:$0xff]
    %v45 = vld [vmem:[%s1 + $0x18] sm:$0xff]
    %v46 = vld [vmem:[%s1 + $0x20] sm:$0xff]
    %v47 = vld [vmem:[%s1 + $0x28] sm:$0xff]
    %v48 = vld [vmem:[%s1 + $0x30] sm:$0xff]
    %v49 = vld [vmem:[%s1 + $0x38] sm:$0xff]
    %vm50 = vcmask 523264
    %v52 = vsel %vm50, %v42, 0
    %v55 = vsel %vm50, %v43, 0
    %v58 = vsel %vm50, %v44, 0
    %v61 = vsel %vm50, %v45, 0
    %v64 = vsel %vm50, %v46, 0
    %v67 = vsel %vm50, %v47, 0
    %v70 = vsel %vm50, %v48, 0
    %v73 = vsel %vm50, %v49, 0
    %75 = vmatpush.msra.mxu0 0.0
    %76 = vmatpush.msra.mxu0 0.0
    %77 = vmatpush.msra.mxu0 0.0
    %78 = vmatpush.msra.mxu0 0.0
    %79 = vmatpush.msra.mxu0 0.0
    %80 = vmatpush.msra.mxu0 0.0
    %81 = vmatpush.msra.mxu0 0.0
    %82 = vmatpush.msra.mxu0 0.0
    %83 = vmatpush.msra.mxu0 %v25
    %84 = vmatpush.msra.mxu0 %v24
    %85 = vmatpush.msra.mxu0 %v23
    %86 = vmatpush.msra.mxu0 %v22
    %87 = vmatpush.msra.mxu0 %v21
    %88 = vmatpush.msra.mxu0 %v20
    %89 = vmatpush.msra.mxu0 %v19
    %90 = vmatpush.msra.mxu0 %v18
    %91 = vmatmul.f32.gmra.mxu0 %v52
    %v92 = vpop.f32.mrf.mxu0
    %v93 = vadd.f32 0.0, %v92
    %94 = vmatmul.f32.gmra.mxu0 %v55
    %v95 = vpop.f32.mrf.mxu0
    %v96 = vadd.f32 0.0, %v95
    %97 = vmatmul.f32.gmra.mxu0 %v58
    %v98 = vpop.f32.mrf.mxu0
    %v99 = vadd.f32 0.0, %v98
    %100 = vmatmul.f32.gmra.mxu0 %v61
    %v101 = vpop.f32.mrf.mxu0
    %v102 = vadd.f32 0.0, %v101
    %103 = vmatmul.f32.gmra.mxu0 %v64
    %v104 = vpop.f32.mrf.mxu0
    %v105 = vadd.f32 0.0, %v104
    %106 = vmatmul.f32.gmra.mxu0 %v67
    %v107 = vpop.f32.mrf.mxu0
    %v108 = vadd.f32 0.0, %v107
    %109 = vmatmul.f32.gmra.mxu0 %v70
    %v110 = vpop.f32.mrf.mxu0
    %v111 = vadd.f32 0.0, %v110
    %112 = vmatmul.f32.gmra.mxu0 %v73
    %v113 = vpop.f32.mrf.mxu0
    %v114 = vadd.f32 0.0, %v113
    %115 = vdwg.mxu0
    %s116 = scalar_lea.vmem %s2, 128
    %v117 = vld [vmem:[%s116] sm:$0xff]
    %v118 = vld [vmem:[%s116 + $0x8] sm:$0xff]
    %v119 = vld [vmem:[%s116 + $0x10] sm:$0xff]
    %v120 = vld [vmem:[%s116 + $0x18] sm:$0xff]
    %v121 = vld [vmem:[%s116 + $0x20] sm:$0xff]
    %v122 = vld [vmem:[%s116 + $0x28] sm:$0xff]
    %v123 = vld [vmem:[%s116 + $0x30] sm:$0xff]
    %v124 = vld [vmem:[%s116 + $0x38] sm:$0xff]
    %v125 = vld [vmem:[%s116 + $0x40] sm:$0xff]
    %v126 = vld [vmem:[%s116 + $0x48] sm:$0xff]
    %v127 = vld [vmem:[%s116 + $0x50] sm:$0xff]
    %v128 = vld [vmem:[%s116 + $0x58] sm:$0xff]
    %v129 = vld [vmem:[%s116 + $0x60] sm:$0xff]
    %v130 = vld [vmem:[%s116 + $0x68] sm:$0xff]
    %v131 = vld [vmem:[%s116 + $0x70] sm:$0xff]
    %v132 = vld [vmem:[%s116 + $0x78] sm:$0xff]
    %v134 = vsel %vm50, %v117, 0
    %v137 = vsel %vm50, %v118, 0
    %v140 = vsel %vm50, %v119, 0
    %v143 = vsel %vm50, %v120, 0
    %v146 = vsel %vm50, %v121, 0
    %v149 = vsel %vm50, %v122, 0
    %v152 = vsel %vm50, %v123, 0
    %v155 = vsel %vm50, %v124, 0
    %v158 = vsel %vm50, %v125, 0
    %v161 = vsel %vm50, %v126, 0
    %v164 = vsel %vm50, %v127, 0
    %v167 = vsel %vm50, %v128, 0
    %v170 = vsel %vm50, %v129, 0
    %v173 = vsel %vm50, %v130, 0
    %v176 = vsel %vm50, %v131, 0
    %v179 = vsel %vm50, %v132, 0
    %181 = vmatpush.msra.mxu0 0.0
    %182 = vmatpush.msra.mxu0 0.0
    %183 = vmatpush.msra.mxu0 0.0
    %184 = vmatpush.msra.mxu0 0.0
    %185 = vmatpush.msra.mxu0 0.0
    %186 = vmatpush.msra.mxu0 0.0
    %187 = vmatpush.msra.mxu0 0.0
    %188 = vmatpush.msra.mxu0 0.0
    %189 = vmatpush.msra.mxu0 %v114
    %190 = vmatpush.msra.mxu0 %v111
    %191 = vmatpush.msra.mxu0 %v108
    %192 = vmatpush.msra.mxu0 %v105
    %193 = vmatpush.msra.mxu0 %v102
    %194 = vmatpush.msra.mxu0 %v99
    %195 = vmatpush.msra.mxu0 %v96
    %196 = vmatpush.msra.mxu0 %v93
    %197 = vmatmul.f32.gmra.mxu0 %v134
    %v198 = vpop.f32.mrf.mxu0
    %v199 = vadd.f32 0.0, %v198
    %200 = vmatmul.f32.gmra.mxu0 %v137
    %v201 = vpop.f32.mrf.mxu0
    %v202 = vadd.f32 0.0, %v201
    %203 = vmatmul.f32.gmra.mxu0 %v140
    %v204 = vpop.f32.mrf.mxu0
    %v205 = vadd.f32 0.0, %v204
    %206 = vmatmul.f32.gmra.mxu0 %v143
    %v207 = vpop.f32.mrf.mxu0
    %v208 = vadd.f32 0.0, %v207
    %209 = vmatmul.f32.gmra.mxu0 %v146
    %v210 = vpop.f32.mrf.mxu0
    %v211 = vadd.f32 0.0, %v210
    %212 = vmatmul.f32.gmra.mxu0 %v149
    %v213 = vpop.f32.mrf.mxu0
    %v214 = vadd.f32 0.0, %v213
    %215 = vmatmul.f32.gmra.mxu0 %v152
    %v216 = vpop.f32.mrf.mxu0
    %v217 = vadd.f32 0.0, %v216
    %218 = vmatmul.f32.gmra.mxu0 %v155
    %v219 = vpop.f32.mrf.mxu0
    %v220 = vadd.f32 0.0, %v219
    %221 = vmatmul.f32.gmra.mxu0 %v158
    %v222 = vpop.f32.mrf.mxu0
    %v223 = vadd.f32 0.0, %v222
    %224 = vmatmul.f32.gmra.mxu0 %v161
    %v225 = vpop.f32.mrf.mxu0
    %v226 = vadd.f32 0.0, %v225
    %227 = vmatmul.f32.gmra.mxu0 %v164
    %v228 = vpop.f32.mrf.mxu0
    %v229 = vadd.f32 0.0, %v228
    %230 = vmatmul.f32.gmra.mxu0 %v167
    %v231 = vpop.f32.mrf.mxu0
    %v232 = vadd.f32 0.0, %v231
    %233 = vmatmul.f32.gmra.mxu0 %v170
    %v234 = vpop.f32.mrf.mxu0
    %v235 = vadd.f32 0.0, %v234
    %236 = vmatmul.f32.gmra.mxu0 %v173
    %v237 = vpop.f32.mrf.mxu0
    %v238 = vadd.f32 0.0, %v237
    %239 = vmatmul.f32.gmra.mxu0 %v176
    %v240 = vpop.f32.mrf.mxu0
    %v241 = vadd.f32 0.0, %v240
    %242 = vmatmul.f32.gmra.mxu0 %v179
    %v243 = vpop.f32.mrf.mxu0
    %v244 = vadd.f32 0.0, %v243
    %245 = vdwg.mxu0
    %v247 = vsel %vm50, %v26, 0
    %v250 = vsel %vm50, %v27, 0
    %v253 = vsel %vm50, %v28, 0
    %v256 = vsel %vm50, %v29, 0
    %v259 = vsel %vm50, %v30, 0
    %v262 = vsel %vm50, %v31, 0
    %v265 = vsel %vm50, %v32, 0
    %v268 = vsel %vm50, %v33, 0
    %v271 = vsel %vm50, %v34, 0
    %v274 = vsel %vm50, %v35, 0
    %v277 = vsel %vm50, %v36, 0
    %v280 = vsel %vm50, %v37, 0
    %v283 = vsel %vm50, %v38, 0
    %v286 = vsel %vm50, %v39, 0
    %v289 = vsel %vm50, %v40, 0
    %v292 = vsel %vm50, %v41, 0
    %294 = vmatpush.msra.mxu0 0.0
    %295 = vmatpush.msra.mxu0 0.0
    %296 = vmatpush.msra.mxu0 0.0
    %297 = vmatpush.msra.mxu0 0.0
    %298 = vmatpush.msra.mxu0 0.0
    %299 = vmatpush.msra.mxu0 0.0
    %300 = vmatpush.msra.mxu0 0.0
    %301 = vmatpush.msra.mxu0 0.0
    %302 = vmatpush.msra.mxu0 %v25
    %303 = vmatpush.msra.mxu0 %v24
    %304 = vmatpush.msra.mxu0 %v23
    %305 = vmatpush.msra.mxu0 %v22
    %306 = vmatpush.msra.mxu0 %v21
    %307 = vmatpush.msra.mxu0 %v20
    %308 = vmatpush.msra.mxu0 %v19
    %309 = vmatpush.msra.mxu0 %v18
    %310 = vmatmul.f32.gmra.mxu0 %v247
    %v311 = vpop.f32.mrf.mxu0
    %v312 = vadd.f32 %v199, %v311
    %313 = vmatmul.f32.gmra.mxu0 %v250
    %v314 = vpop.f32.mrf.mxu0
    %v315 = vadd.f32 %v202, %v314
    %316 = vmatmul.f32.gmra.mxu0 %v253
    %v317 = vpop.f32.mrf.mxu0
    %v318 = vadd.f32 %v205, %v317
    %319 = vmatmul.f32.gmra.mxu0 %v256
    %v320 = vpop.f32.mrf.mxu0
    %v321 = vadd.f32 %v208, %v320
    %322 = vmatmul.f32.gmra.mxu0 %v259
    %v323 = vpop.f32.mrf.mxu0
    %v324 = vadd.f32 %v211, %v323
    %325 = vmatmul.f32.gmra.mxu0 %v262
    %v326 = vpop.f32.mrf.mxu0
    %v327 = vadd.f32 %v214, %v326
    %328 = vmatmul.f32.gmra.mxu0 %v265
    %v329 = vpop.f32.mrf.mxu0
    %v330 = vadd.f32 %v217, %v329
    %331 = vmatmul.f32.gmra.mxu0 %v268
    %v332 = vpop.f32.mrf.mxu0
    %v333 = vadd.f32 %v220, %v332
    %334 = vmatmul.f32.gmra.mxu0 %v271
    %v335 = vpop.f32.mrf.mxu0
    %v336 = vadd.f32 %v223, %v335
    %337 = vmatmul.f32.gmra.mxu0 %v274
    %v338 = vpop.f32.mrf.mxu0
    %v339 = vadd.f32 %v226, %v338
    %340 = vmatmul.f32.gmra.mxu0 %v277
    %v341 = vpop.f32.mrf.mxu0
    %v342 = vadd.f32 %v229, %v341
    %343 = vmatmul.f32.gmra.mxu0 %v280
    %v344 = vpop.f32.mrf.mxu0
    %v345 = vadd.f32 %v232, %v344
    %346 = vmatmul.f32.gmra.mxu0 %v283
    %v347 = vpop.f32.mrf.mxu0
    %v348 = vadd.f32 %v235, %v347
    %349 = vmatmul.f32.gmra.mxu0 %v286
    %v350 = vpop.f32.mrf.mxu0
    %v351 = vadd.f32 %v238, %v350
    %352 = vmatmul.f32.gmra.mxu0 %v289
    %v353 = vpop.f32.mrf.mxu0
    %v354 = vadd.f32 %v241, %v353
    %355 = vmatmul.f32.gmra.mxu0 %v292
    %v356 = vpop.f32.mrf.mxu0
    %v357 = vadd.f32 %v244, %v356
    %358 = vdwg.mxu0
    %359 = vmatpush.msra.mxu0 0.0
    %360 = vmatpush.msra.mxu0 0.0
    %361 = vmatpush.msra.mxu0 0.0
    %362 = vmatpush.msra.mxu0 0.0
    %363 = vmatpush.msra.mxu0 0.0
    %364 = vmatpush.msra.mxu0 0.0
    %365 = vmatpush.msra.mxu0 0.0
    %366 = vmatpush.msra.mxu0 0.0
    %367 = vmatpush.msra.mxu0 %v114
    %368 = vmatpush.msra.mxu0 %v111
    %369 = vmatpush.msra.mxu0 %v108
    %370 = vmatpush.msra.mxu0 %v105
    %371 = vmatpush.msra.mxu0 %v102
    %372 = vmatpush.msra.mxu0 %v99
    %373 = vmatpush.msra.mxu0 %v96
    %374 = vmatpush.msra.mxu0 %v93
    %375 = vmatmul.f32.gmra.mxu0 %v52
    %v376 = vpop.f32.mrf.mxu0
    %v377 = vadd.f32 0.0, %v376
    %378 = vmatmul.f32.gmra.mxu0 %v55
    %v379 = vpop.f32.mrf.mxu0
    %v380 = vadd.f32 0.0, %v379
    %381 = vmatmul.f32.gmra.mxu0 %v58
    %v382 = vpop.f32.mrf.mxu0
    %v383 = vadd.f32 0.0, %v382
    %384 = vmatmul.f32.gmra.mxu0 %v61
    %v385 = vpop.f32.mrf.mxu0
    %v386 = vadd.f32 0.0, %v385
    %387 = vmatmul.f32.gmra.mxu0 %v64
    %v388 = vpop.f32.mrf.mxu0
    %v389 = vadd.f32 0.0, %v388
    %390 = vmatmul.f32.gmra.mxu0 %v67
    %v391 = vpop.f32.mrf.mxu0
    %v392 = vadd.f32 0.0, %v391
    %393 = vmatmul.f32.gmra.mxu0 %v70
    %v394 = vpop.f32.mrf.mxu0
    %v395 = vadd.f32 0.0, %v394
    %396 = vmatmul.f32.gmra.mxu0 %v73
    %v397 = vpop.f32.mrf.mxu0
    %v398 = vadd.f32 0.0, %v397
    %399 = vdwg.mxu0
    %s400 = scalar_lea.vmem %s2, 256
    %v401 = vld [vmem:[%s400] sm:$0xff]
    %v402 = vld [vmem:[%s400 + $0x8] sm:$0xff]
    %v403 = vld [vmem:[%s400 + $0x10] sm:$0xff]
    %v404 = vld [vmem:[%s400 + $0x18] sm:$0xff]
    %v405 = vld [vmem:[%s400 + $0x20] sm:$0xff]
    %v406 = vld [vmem:[%s400 + $0x28] sm:$0xff]
    %v407 = vld [vmem:[%s400 + $0x30] sm:$0xff]
    %v408 = vld [vmem:[%s400 + $0x38] sm:$0xff]
    %v409 = vld [vmem:[%s400 + $0x40] sm:$0xff]
    %v410 = vld [vmem:[%s400 + $0x48] sm:$0xff]
    %v411 = vld [vmem:[%s400 + $0x50] sm:$0xff]
    %v412 = vld [vmem:[%s400 + $0x58] sm:$0xff]
    %v413 = vld [vmem:[%s400 + $0x60] sm:$0xff]
    %v414 = vld [vmem:[%s400 + $0x68] sm:$0xff]
    %v415 = vld [vmem:[%s400 + $0x70] sm:$0xff]
    %v416 = vld [vmem:[%s400 + $0x78] sm:$0xff]
    %v418 = vsel %vm50, %v401, 0
    %v421 = vsel %vm50, %v402, 0
    %v424 = vsel %vm50, %v403, 0
    %v427 = vsel %vm50, %v404, 0
    %v430 = vsel %vm50, %v405, 0
    %v433 = vsel %vm50, %v406, 0
    %v436 = vsel %vm50, %v407, 0
    %v439 = vsel %vm50, %v408, 0
    %v442 = vsel %vm50, %v409, 0
    %v445 = vsel %vm50, %v410, 0
    %v448 = vsel %vm50, %v411, 0
    %v451 = vsel %vm50, %v412, 0
    %v454 = vsel %vm50, %v413, 0
    %v457 = vsel %vm50, %v414, 0
    %v460 = vsel %vm50, %v415, 0
    %v463 = vsel %vm50, %v416, 0
    %465 = vmatpush.msra.mxu0 0.0
    %466 = vmatpush.msra.mxu0 0.0
    %467 = vmatpush.msra.mxu0 0.0
    %468 = vmatpush.msra.mxu0 0.0
    %469 = vmatpush.msra.mxu0 0.0
    %470 = vmatpush.msra.mxu0 0.0
    %471 = vmatpush.msra.mxu0 0.0
    %472 = vmatpush.msra.mxu0 0.0
    %473 = vmatpush.msra.mxu0 %v398
    %474 = vmatpush.msra.mxu0 %v395
    %475 = vmatpush.msra.mxu0 %v392
    %476 = vmatpush.msra.mxu0 %v389
    %477 = vmatpush.msra.mxu0 %v386
    %478 = vmatpush.msra.mxu0 %v383
    %479 = vmatpush.msra.mxu0 %v380
    %480 = vmatpush.msra.mxu0 %v377
    %481 = vmatmul.f32.gmra.mxu0 %v418
    %v482 = vpop.f32.mrf.mxu0
    %v483 = vadd.f32 0.0, %v482
    %484 = vmatmul.f32.gmra.mxu0 %v421
    %v485 = vpop.f32.mrf.mxu0
    %v486 = vadd.f32 0.0, %v485
    %487 = vmatmul.f32.gmra.mxu0 %v424
    %v488 = vpop.f32.mrf.mxu0
    %v489 = vadd.f32 0.0, %v488
    %490 = vmatmul.f32.gmra.mxu0 %v427
    %v491 = vpop.f32.mrf.mxu0
    %v492 = vadd.f32 0.0, %v491
    %493 = vmatmul.f32.gmra.mxu0 %v430
    %v494 = vpop.f32.mrf.mxu0
    %v495 = vadd.f32 0.0, %v494
    %496 = vmatmul.f32.gmra.mxu0 %v433
    %v497 = vpop.f32.mrf.mxu0
    %v498 = vadd.f32 0.0, %v497
    %499 = vmatmul.f32.gmra.mxu0 %v436
    %v500 = vpop.f32.mrf.mxu0
    %v501 = vadd.f32 0.0, %v500
    %502 = vmatmul.f32.gmra.mxu0 %v439
    %v503 = vpop.f32.mrf.mxu0
    %v504 = vadd.f32 0.0, %v503
    %505 = vmatmul.f32.gmra.mxu0 %v442
    %v506 = vpop.f32.mrf.mxu0
    %v507 = vadd.f32 0.0, %v506
    %508 = vmatmul.f32.gmra.mxu0 %v445
    %v509 = vpop.f32.mrf.mxu0
    %v510 = vadd.f32 0.0, %v509
    %511 = vmatmul.f32.gmra.mxu0 %v448
    %v512 = vpop.f32.mrf.mxu0
    %v513 = vadd.f32 0.0, %v512
    %514 = vmatmul.f32.gmra.mxu0 %v451
    %v515 = vpop.f32.mrf.mxu0
    %v516 = vadd.f32 0.0, %v515
    %517 = vmatmul.f32.gmra.mxu0 %v454
    %v518 = vpop.f32.mrf.mxu0
    %v519 = vadd.f32 0.0, %v518
    %520 = vmatmul.f32.gmra.mxu0 %v457
    %v521 = vpop.f32.mrf.mxu0
    %v522 = vadd.f32 0.0, %v521
    %523 = vmatmul.f32.gmra.mxu0 %v460
    %v524 = vpop.f32.mrf.mxu0
    %v525 = vadd.f32 0.0, %v524
    %526 = vmatmul.f32.gmra.mxu0 %v463
    %v527 = vpop.f32.mrf.mxu0
    %v528 = vadd.f32 0.0, %v527
    %529 = vdwg.mxu0
    %v530 = vadd.f32 %v312, %v483
    %v531 = vadd.f32 %v315, %v486
    %v532 = vadd.f32 %v318, %v489
    %v533 = vadd.f32 %v321, %v492
    %v534 = vadd.f32 %v324, %v495
    %v535 = vadd.f32 %v327, %v498
    %v536 = vadd.f32 %v330, %v501
    %v537 = vadd.f32 %v333, %v504
    %v538 = vadd.f32 %v336, %v507
    %v539 = vadd.f32 %v339, %v510
    %v540 = vadd.f32 %v342, %v513
    %v541 = vadd.f32 %v345, %v516
    %v542 = vadd.f32 %v348, %v519
    %v543 = vadd.f32 %v351, %v522
    %v544 = vadd.f32 %v354, %v525
    %v545 = vadd.f32 %v357, %v528
    %s546 = scalar_lea.vmem %s1, 64
    %v547 = vld [vmem:[%s546] sm:$0xff]
    %v548 = vld [vmem:[%s546 + $0x8] sm:$0xff]
    %v549 = vld [vmem:[%s546 + $0x10] sm:$0xff]
    %v550 = vld [vmem:[%s546 + $0x18] sm:$0xff]
    %v551 = vld [vmem:[%s546 + $0x20] sm:$0xff]
    %v552 = vld [vmem:[%s546 + $0x28] sm:$0xff]
    %v553 = vld [vmem:[%s546 + $0x30] sm:$0xff]
    %v554 = vld [vmem:[%s546 + $0x38] sm:$0xff]
    %v556 = vsel %vm50, %v547, 0
    %v559 = vsel %vm50, %v548, 0
    %v562 = vsel %vm50, %v549, 0
    %v565 = vsel %vm50, %v550, 0
    %v568 = vsel %vm50, %v551, 0
    %v571 = vsel %vm50, %v552, 0
    %v574 = vsel %vm50, %v553, 0
    %v577 = vsel %vm50, %v554, 0
    %579 = vmatpush.msra.mxu0 0.0
    %580 = vmatpush.msra.mxu0 0.0
    %581 = vmatpush.msra.mxu0 0.0
    %582 = vmatpush.msra.mxu0 0.0
    %583 = vmatpush.msra.mxu0 0.0
    %584 = vmatpush.msra.mxu0 0.0
    %585 = vmatpush.msra.mxu0 0.0
    %586 = vmatpush.msra.mxu0 0.0
    %587 = vmatpush.msra.mxu0 %v25
    %588 = vmatpush.msra.mxu0 %v24
    %589 = vmatpush.msra.mxu0 %v23
    %590 = vmatpush.msra.mxu0 %v22
    %591 = vmatpush.msra.mxu0 %v21
    %592 = vmatpush.msra.mxu0 %v20
    %593 = vmatpush.msra.mxu0 %v19
    %594 = vmatpush.msra.mxu0 %v18
    %595 = vmatmul.f32.gmra.mxu0 %v556
    %v596 = vpop.f32.mrf.mxu0
    %v597 = vadd.f32 0.0, %v596
    %598 = vmatmul.f32.gmra.mxu0 %v559
    %v599 = vpop.f32.mrf.mxu0
    %v600 = vadd.f32 0.0, %v599
    %601 = vmatmul.f32.gmra.mxu0 %v562
    %v602 = vpop.f32.mrf.mxu0
    %v603 = vadd.f32 0.0, %v602
    %604 = vmatmul.f32.gmra.mxu0 %v565
    %v605 = vpop.f32.mrf.mxu0
    %v606 = vadd.f32 0.0, %v605
    %607 = vmatmul.f32.gmra.mxu0 %v568
    %v608 = vpop.f32.mrf.mxu0
    %v609 = vadd.f32 0.0, %v608
    %610 = vmatmul.f32.gmra.mxu0 %v571
    %v611 = vpop.f32.mrf.mxu0
    %v612 = vadd.f32 0.0, %v611
    %613 = vmatmul.f32.gmra.mxu0 %v574
    %v614 = vpop.f32.mrf.mxu0
    %v615 = vadd.f32 0.0, %v614
    %616 = vmatmul.f32.gmra.mxu0 %v577
    %v617 = vpop.f32.mrf.mxu0
    %v618 = vadd.f32 0.0, %v617
    %619 = vdwg.mxu0
    %s620 = scalar_lea.vmem %s2, 384
    %v621 = vld [vmem:[%s620] sm:$0xff]
    %v622 = vld [vmem:[%s620 + $0x8] sm:$0xff]
    %v623 = vld [vmem:[%s620 + $0x10] sm:$0xff]
    %v624 = vld [vmem:[%s620 + $0x18] sm:$0xff]
    %v625 = vld [vmem:[%s620 + $0x20] sm:$0xff]
    %v626 = vld [vmem:[%s620 + $0x28] sm:$0xff]
    %v627 = vld [vmem:[%s620 + $0x30] sm:$0xff]
    %v628 = vld [vmem:[%s620 + $0x38] sm:$0xff]
    %v629 = vld [vmem:[%s620 + $0x40] sm:$0xff]
    %v630 = vld [vmem:[%s620 + $0x48] sm:$0xff]
    %v631 = vld [vmem:[%s620 + $0x50] sm:$0xff]
    %v632 = vld [vmem:[%s620 + $0x58] sm:$0xff]
    %v633 = vld [vmem:[%s620 + $0x60] sm:$0xff]
    %v634 = vld [vmem:[%s620 + $0x68] sm:$0xff]
    %v635 = vld [vmem:[%s620 + $0x70] sm:$0xff]
    %v636 = vld [vmem:[%s620 + $0x78] sm:$0xff]
    %v638 = vsel %vm50, %v621, 0
    %v641 = vsel %vm50, %v622, 0
    %v644 = vsel %vm50, %v623, 0
    %v647 = vsel %vm50, %v624, 0
    %v650 = vsel %vm50, %v625, 0
    %v653 = vsel %vm50, %v626, 0
    %v656 = vsel %vm50, %v627, 0
    %v659 = vsel %vm50, %v628, 0
    %v662 = vsel %vm50, %v629, 0
    %v665 = vsel %vm50, %v630, 0
    %v668 = vsel %vm50, %v631, 0
    %v671 = vsel %vm50, %v632, 0
    %v674 = vsel %vm50, %v633, 0
    %v677 = vsel %vm50, %v634, 0
    %v680 = vsel %vm50, %v635, 0
    %v683 = vsel %vm50, %v636, 0
    %685 = vmatpush.msra.mxu0 0.0
    %686 = vmatpush.msra.mxu0 0.0
    %687 = vmatpush.msra.mxu0 0.0
    %688 = vmatpush.msra.mxu0 0.0
    %689 = vmatpush.msra.mxu0 0.0
    %690 = vmatpush.msra.mxu0 0.0
    %691 = vmatpush.msra.mxu0 0.0
    %692 = vmatpush.msra.mxu0 0.0
    %693 = vmatpush.msra.mxu0 %v618
    %694 = vmatpush.msra.mxu0 %v615
    %695 = vmatpush.msra.mxu0 %v612
    %696 = vmatpush.msra.mxu0 %v609
    %697 = vmatpush.msra.mxu0 %v606
    %698 = vmatpush.msra.mxu0 %v603
    %699 = vmatpush.msra.mxu0 %v600
    %700 = vmatpush.msra.mxu0 %v597
    %701 = vmatmul.f32.gmra.mxu0 %v638
    %v702 = vpop.f32.mrf.mxu0
    %v703 = vadd.f32 0.0, %v702
    %704 = vmatmul.f32.gmra.mxu0 %v641
    %v705 = vpop.f32.mrf.mxu0
    %v706 = vadd.f32 0.0, %v705
    %707 = vmatmul.f32.gmra.mxu0 %v644
    %v708 = vpop.f32.mrf.mxu0
    %v709 = vadd.f32 0.0, %v708
    %710 = vmatmul.f32.gmra.mxu0 %v647
    %v711 = vpop.f32.mrf.mxu0
    %v712 = vadd.f32 0.0, %v711
    %713 = vmatmul.f32.gmra.mxu0 %v650
    %v714 = vpop.f32.mrf.mxu0
    %v715 = vadd.f32 0.0, %v714
    %716 = vmatmul.f32.gmra.mxu0 %v653
    %v717 = vpop.f32.mrf.mxu0
    %v718 = vadd.f32 0.0, %v717
    %719 = vmatmul.f32.gmra.mxu0 %v656
    %v720 = vpop.f32.mrf.mxu0
    %v721 = vadd.f32 0.0, %v720
    %722 = vmatmul.f32.gmra.mxu0 %v659
    %v723 = vpop.f32.mrf.mxu0
    %v724 = vadd.f32 0.0, %v723
    %725 = vmatmul.f32.gmra.mxu0 %v662
    %v726 = vpop.f32.mrf.mxu0
    %v727 = vadd.f32 0.0, %v726
    %728 = vmatmul.f32.gmra.mxu0 %v665
    %v729 = vpop.f32.mrf.mxu0
    %v730 = vadd.f32 0.0, %v729
    %731 = vmatmul.f32.gmra.mxu0 %v668
    %v732 = vpop.f32.mrf.mxu0
    %v733 = vadd.f32 0.0, %v732
    %734 = vmatmul.f32.gmra.mxu0 %v671
    %v735 = vpop.f32.mrf.mxu0
    %v736 = vadd.f32 0.0, %v735
    %737 = vmatmul.f32.gmra.mxu0 %v674
    %v738 = vpop.f32.mrf.mxu0
    %v739 = vadd.f32 0.0, %v738
    %740 = vmatmul.f32.gmra.mxu0 %v677
    %v741 = vpop.f32.mrf.mxu0
    %v742 = vadd.f32 0.0, %v741
    %743 = vmatmul.f32.gmra.mxu0 %v680
    %v744 = vpop.f32.mrf.mxu0
    %v745 = vadd.f32 0.0, %v744
    %746 = vmatmul.f32.gmra.mxu0 %v683
    %v747 = vpop.f32.mrf.mxu0
    %v748 = vadd.f32 0.0, %v747
    %749 = vdwg.mxu0
    %v750 = vadd.f32 %v530, %v703
    %v751 = vadd.f32 %v531, %v706
    %v752 = vadd.f32 %v532, %v709
    %v753 = vadd.f32 %v533, %v712
    %v754 = vadd.f32 %v534, %v715
    %v755 = vadd.f32 %v535, %v718
    %v756 = vadd.f32 %v536, %v721
    %v757 = vadd.f32 %v537, %v724
    %v758 = vadd.f32 %v538, %v727
    %v759 = vadd.f32 %v539, %v730
    %v760 = vadd.f32 %v540, %v733
    %v761 = vadd.f32 %v541, %v736
    %v762 = vadd.f32 %v542, %v739
    %v763 = vadd.f32 %v543, %v742
    %v764 = vadd.f32 %v544, %v745
    %v765 = vadd.f32 %v545, %v748
    %766 = vmatpush.msra.mxu0 0.0
    %767 = vmatpush.msra.mxu0 0.0
    %768 = vmatpush.msra.mxu0 0.0
    %769 = vmatpush.msra.mxu0 0.0
    %770 = vmatpush.msra.mxu0 0.0
    %771 = vmatpush.msra.mxu0 0.0
    %772 = vmatpush.msra.mxu0 0.0
    %773 = vmatpush.msra.mxu0 0.0
    %774 = vmatpush.msra.mxu0 %v618
    %775 = vmatpush.msra.mxu0 %v615
    %776 = vmatpush.msra.mxu0 %v612
    %777 = vmatpush.msra.mxu0 %v609
    %778 = vmatpush.msra.mxu0 %v606
    %779 = vmatpush.msra.mxu0 %v603
    %780 = vmatpush.msra.mxu0 %v600
    %781 = vmatpush.msra.mxu0 %v597
    %782 = vmatmul.f32.gmra.mxu0 %v556
    %v783 = vpop.f32.mrf.mxu0
    %v784 = vadd.f32 0.0, %v783
    %785 = vmatmul.f32.gmra.mxu0 %v559
    %v786 = vpop.f32.mrf.mxu0
    %v787 = vadd.f32 0.0, %v786
    %788 = vmatmul.f32.gmra.mxu0 %v562
    %v789 = vpop.f32.mrf.mxu0
    %v790 = vadd.f32 0.0, %v789
    %791 = vmatmul.f32.gmra.mxu0 %v565
    %v792 = vpop.f32.mrf.mxu0
    %v793 = vadd.f32 0.0, %v792
    %794 = vmatmul.f32.gmra.mxu0 %v568
    %v795 = vpop.f32.mrf.mxu0
    %v796 = vadd.f32 0.0, %v795
    %797 = vmatmul.f32.gmra.mxu0 %v571
    %v798 = vpop.f32.mrf.mxu0
    %v799 = vadd.f32 0.0, %v798
    %800 = vmatmul.f32.gmra.mxu0 %v574
    %v801 = vpop.f32.mrf.mxu0
    %v802 = vadd.f32 0.0, %v801
    %803 = vmatmul.f32.gmra.mxu0 %v577
    %v804 = vpop.f32.mrf.mxu0
    %v805 = vadd.f32 0.0, %v804
    %806 = vdwg.mxu0
    %s807 = scalar_lea.vmem %s2, 512
    %v808 = vld [vmem:[%s807] sm:$0xff]
    %v809 = vld [vmem:[%s807 + $0x8] sm:$0xff]
    %v810 = vld [vmem:[%s807 + $0x10] sm:$0xff]
    %v811 = vld [vmem:[%s807 + $0x18] sm:$0xff]
    %v812 = vld [vmem:[%s807 + $0x20] sm:$0xff]
    %v813 = vld [vmem:[%s807 + $0x28] sm:$0xff]
    %v814 = vld [vmem:[%s807 + $0x30] sm:$0xff]
    %v815 = vld [vmem:[%s807 + $0x38] sm:$0xff]
    %v816 = vld [vmem:[%s807 + $0x40] sm:$0xff]
    %v817 = vld [vmem:[%s807 + $0x48] sm:$0xff]
    %v818 = vld [vmem:[%s807 + $0x50] sm:$0xff]
    %v819 = vld [vmem:[%s807 + $0x58] sm:$0xff]
    %v820 = vld [vmem:[%s807 + $0x60] sm:$0xff]
    %v821 = vld [vmem:[%s807 + $0x68] sm:$0xff]
    %v822 = vld [vmem:[%s807 + $0x70] sm:$0xff]
    %v823 = vld [vmem:[%s807 + $0x78] sm:$0xff]
    %v825 = vsel %vm50, %v808, 0
    %v828 = vsel %vm50, %v809, 0
    %v831 = vsel %vm50, %v810, 0
    %v834 = vsel %vm50, %v811, 0
    %v837 = vsel %vm50, %v812, 0
    %v840 = vsel %vm50, %v813, 0
    %v843 = vsel %vm50, %v814, 0
    %v846 = vsel %vm50, %v815, 0
    %v849 = vsel %vm50, %v816, 0
    %v852 = vsel %vm50, %v817, 0
    %v855 = vsel %vm50, %v818, 0
    %v858 = vsel %vm50, %v819, 0
    %v861 = vsel %vm50, %v820, 0
    %v864 = vsel %vm50, %v821, 0
    %v867 = vsel %vm50, %v822, 0
    %v870 = vsel %vm50, %v823, 0
    %872 = vmatpush.msra.mxu0 0.0
    %873 = vmatpush.msra.mxu0 0.0
    %874 = vmatpush.msra.mxu0 0.0
    %875 = vmatpush.msra.mxu0 0.0
    %876 = vmatpush.msra.mxu0 0.0
    %877 = vmatpush.msra.mxu0 0.0
    %878 = vmatpush.msra.mxu0 0.0
    %879 = vmatpush.msra.mxu0 0.0
    %880 = vmatpush.msra.mxu0 %v805
    %881 = vmatpush.msra.mxu0 %v802
    %882 = vmatpush.msra.mxu0 %v799
    %883 = vmatpush.msra.mxu0 %v796
    %884 = vmatpush.msra.mxu0 %v793
    %885 = vmatpush.msra.mxu0 %v790
    %886 = vmatpush.msra.mxu0 %v787
    %887 = vmatpush.msra.mxu0 %v784
    %888 = vmatmul.f32.gmra.mxu0 %v825
    %v889 = vpop.f32.mrf.mxu0
    %v890 = vadd.f32 0.0, %v889
    %891 = vmatmul.f32.gmra.mxu0 %v828
    %v892 = vpop.f32.mrf.mxu0
    %v893 = vadd.f32 0.0, %v892
    %894 = vmatmul.f32.gmra.mxu0 %v831
    %v895 = vpop.f32.mrf.mxu0
    %v896 = vadd.f32 0.0, %v895
    %897 = vmatmul.f32.gmra.mxu0 %v834
    %v898 = vpop.f32.mrf.mxu0
    %v899 = vadd.f32 0.0, %v898
    %900 = vmatmul.f32.gmra.mxu0 %v837
    %v901 = vpop.f32.mrf.mxu0
    %v902 = vadd.f32 0.0, %v901
    %903 = vmatmul.f32.gmra.mxu0 %v840
    %v904 = vpop.f32.mrf.mxu0
    %v905 = vadd.f32 0.0, %v904
    %906 = vmatmul.f32.gmra.mxu0 %v843
    %v907 = vpop.f32.mrf.mxu0
    %v908 = vadd.f32 0.0, %v907
    %909 = vmatmul.f32.gmra.mxu0 %v846
    %v910 = vpop.f32.mrf.mxu0
    %v911 = vadd.f32 0.0, %v910
    %912 = vmatmul.f32.gmra.mxu0 %v849
    %v913 = vpop.f32.mrf.mxu0
    %v914 = vadd.f32 0.0, %v913
    %915 = vmatmul.f32.gmra.mxu0 %v852
    %v916 = vpop.f32.mrf.mxu0
    %v917 = vadd.f32 0.0, %v916
    %918 = vmatmul.f32.gmra.mxu0 %v855
    %v919 = vpop.f32.mrf.mxu0
    %v920 = vadd.f32 0.0, %v919
    %921 = vmatmul.f32.gmra.mxu0 %v858
    %v922 = vpop.f32.mrf.mxu0
    %v923 = vadd.f32 0.0, %v922
    %924 = vmatmul.f32.gmra.mxu0 %v861
    %v925 = vpop.f32.mrf.mxu0
    %v926 = vadd.f32 0.0, %v925
    %927 = vmatmul.f32.gmra.mxu0 %v864
    %v928 = vpop.f32.mrf.mxu0
    %v929 = vadd.f32 0.0, %v928
    %930 = vmatmul.f32.gmra.mxu0 %v867
    %v931 = vpop.f32.mrf.mxu0
    %v932 = vadd.f32 0.0, %v931
    %933 = vmatmul.f32.gmra.mxu0 %v870
    %v934 = vpop.f32.mrf.mxu0
    %v935 = vadd.f32 0.0, %v934
    %936 = vdwg.mxu0
    %v937 = vadd.f32 %v750, %v890
    %v938 = vadd.f32 %v751, %v893
    %v939 = vadd.f32 %v752, %v896
    %v940 = vadd.f32 %v753, %v899
    %v941 = vadd.f32 %v754, %v902
    %v942 = vadd.f32 %v755, %v905
    %v943 = vadd.f32 %v756, %v908
    %v944 = vadd.f32 %v757, %v911
    %v945 = vadd.f32 %v758, %v914
    %v946 = vadd.f32 %v759, %v917
    %v947 = vadd.f32 %v760, %v920
    %v948 = vadd.f32 %v761, %v923
    %v949 = vadd.f32 %v762, %v926
    %v950 = vadd.f32 %v763, %v929
    %v951 = vadd.f32 %v764, %v932
    %v952 = vadd.f32 %v765, %v935
    %s953 = scalar_lea.vmem %s1, 128
    %v954 = vld [vmem:[%s953] sm:$0xff]
    %v955 = vld [vmem:[%s953 + $0x8] sm:$0xff]
    %v956 = vld [vmem:[%s953 + $0x10] sm:$0xff]
    %v957 = vld [vmem:[%s953 + $0x18] sm:$0xff]
    %v958 = vld [vmem:[%s953 + $0x20] sm:$0xff]
    %v959 = vld [vmem:[%s953 + $0x28] sm:$0xff]
    %v960 = vld [vmem:[%s953 + $0x30] sm:$0xff]
    %v961 = vld [vmem:[%s953 + $0x38] sm:$0xff]
    %v963 = vsel %vm50, %v954, 0
    %v966 = vsel %vm50, %v955, 0
    %v969 = vsel %vm50, %v956, 0
    %v972 = vsel %vm50, %v957, 0
    %v975 = vsel %vm50, %v958, 0
    %v978 = vsel %vm50, %v959, 0
    %v981 = vsel %vm50, %v960, 0
    %v984 = vsel %vm50, %v961, 0
    %986 = vmatpush.msra.mxu0 0.0
    %987 = vmatpush.msra.mxu0 0.0
    %988 = vmatpush.msra.mxu0 0.0
    %989 = vmatpush.msra.mxu0 0.0
    %990 = vmatpush.msra.mxu0 0.0
    %991 = vmatpush.msra.mxu0 0.0
    %992 = vmatpush.msra.mxu0 0.0
    %993 = vmatpush.msra.mxu0 0.0
    %994 = vmatpush.msra.mxu0 %v25
    %995 = vmatpush.msra.mxu0 %v24
    %996 = vmatpush.msra.mxu0 %v23
    %997 = vmatpush.msra.mxu0 %v22
    %998 = vmatpush.msra.mxu0 %v21
    %999 = vmatpush.msra.mxu0 %v20
    %1000 = vmatpush.msra.mxu0 %v19
    %1001 = vmatpush.msra.mxu0 %v18
    %1002 = vmatmul.f32.gmra.mxu0 %v963
    %v1003 = vpop.f32.mrf.mxu0
    %v1004 = vadd.f32 0.0, %v1003
    %1005 = vmatmul.f32.gmra.mxu0 %v966
    %v1006 = vpop.f32.mrf.mxu0
    %v1007 = vadd.f32 0.0, %v1006
    %1008 = vmatmul.f32.gmra.mxu0 %v969
    %v1009 = vpop.f32.mrf.mxu0
    %v1010 = vadd.f32 0.0, %v1009
    %1011 = vmatmul.f32.gmra.mxu0 %v972
    %v1012 = vpop.f32.mrf.mxu0
    %v1013 = vadd.f32 0.0, %v1012
    %1014 = vmatmul.f32.gmra.mxu0 %v975
    %v1015 = vpop.f32.mrf.mxu0
    %v1016 = vadd.f32 0.0, %v1015
    %1017 = vmatmul.f32.gmra.mxu0 %v978
    %v1018 = vpop.f32.mrf.mxu0
    %v1019 = vadd.f32 0.0, %v1018
    %1020 = vmatmul.f32.gmra.mxu0 %v981
    %v1021 = vpop.f32.mrf.mxu0
    %v1022 = vadd.f32 0.0, %v1021
    %1023 = vmatmul.f32.gmra.mxu0 %v984
    %v1024 = vpop.f32.mrf.mxu0
    %v1025 = vadd.f32 0.0, %v1024
    %1026 = vdwg.mxu0
    %s1027 = scalar_lea.vmem %s2, 640
    %v1028 = vld [vmem:[%s1027] sm:$0xff]
    %v1029 = vld [vmem:[%s1027 + $0x8] sm:$0xff]
    %v1030 = vld [vmem:[%s1027 + $0x10] sm:$0xff]
    %v1031 = vld [vmem:[%s1027 + $0x18] sm:$0xff]
    %v1032 = vld [vmem:[%s1027 + $0x20] sm:$0xff]
    %v1033 = vld [vmem:[%s1027 + $0x28] sm:$0xff]
    %v1034 = vld [vmem:[%s1027 + $0x30] sm:$0xff]
    %v1035 = vld [vmem:[%s1027 + $0x38] sm:$0xff]
    %v1036 = vld [vmem:[%s1027 + $0x40] sm:$0xff]
    %v1037 = vld [vmem:[%s1027 + $0x48] sm:$0xff]
    %v1038 = vld [vmem:[%s1027 + $0x50] sm:$0xff]
    %v1039 = vld [vmem:[%s1027 + $0x58] sm:$0xff]
    %v1040 = vld [vmem:[%s1027 + $0x60] sm:$0xff]
    %v1041 = vld [vmem:[%s1027 + $0x68] sm:$0xff]
    %v1042 = vld [vmem:[%s1027 + $0x70] sm:$0xff]
    %v1043 = vld [vmem:[%s1027 + $0x78] sm:$0xff]
    %v1045 = vsel %vm50, %v1028, 0
    %v1048 = vsel %vm50, %v1029, 0
    %v1051 = vsel %vm50, %v1030, 0
    %v1054 = vsel %vm50, %v1031, 0
    %v1057 = vsel %vm50, %v1032, 0
    %v1060 = vsel %vm50, %v1033, 0
    %v1063 = vsel %vm50, %v1034, 0
    %v1066 = vsel %vm50, %v1035, 0
    %v1069 = vsel %vm50, %v1036, 0
    %v1072 = vsel %vm50, %v1037, 0
    %v1075 = vsel %vm50, %v1038, 0
    %v1078 = vsel %vm50, %v1039, 0
    %v1081 = vsel %vm50, %v1040, 0
    %v1084 = vsel %vm50, %v1041, 0
    %v1087 = vsel %vm50, %v1042, 0
    %v1090 = vsel %vm50, %v1043, 0
    %1092 = vmatpush.msra.mxu0 0.0
    %1093 = vmatpush.msra.mxu0 0.0
    %1094 = vmatpush.msra.mxu0 0.0
    %1095 = vmatpush.msra.mxu0 0.0
    %1096 = vmatpush.msra.mxu0 0.0
    %1097 = vmatpush.msra.mxu0 0.0
    %1098 = vmatpush.msra.mxu0 0.0
    %1099 = vmatpush.msra.mxu0 0.0
    %1100 = vmatpush.msra.mxu0 %v1025
    %1101 = vmatpush.msra.mxu0 %v1022
    %1102 = vmatpush.msra.mxu0 %v1019
    %1103 = vmatpush.msra.mxu0 %v1016
    %1104 = vmatpush.msra.mxu0 %v1013
    %1105 = vmatpush.msra.mxu0 %v1010
    %1106 = vmatpush.msra.mxu0 %v1007
    %1107 = vmatpush.msra.mxu0 %v1004
    %1108 = vmatmul.f32.gmra.mxu0 %v1045
    %v1109 = vpop.f32.mrf.mxu0
    %v1110 = vadd.f32 0.0, %v1109
    %1111 = vmatmul.f32.gmra.mxu0 %v1048
    %v1112 = vpop.f32.mrf.mxu0
    %v1113 = vadd.f32 0.0, %v1112
    %1114 = vmatmul.f32.gmra.mxu0 %v1051
    %v1115 = vpop.f32.mrf.mxu0
    %v1116 = vadd.f32 0.0, %v1115
    %1117 = vmatmul.f32.gmra.mxu0 %v1054
    %v1118 = vpop.f32.mrf.mxu0
    %v1119 = vadd.f32 0.0, %v1118
    %1120 = vmatmul.f32.gmra.mxu0 %v1057
    %v1121 = vpop.f32.mrf.mxu0
    %v1122 = vadd.f32 0.0, %v1121
    %1123 = vmatmul.f32.gmra.mxu0 %v1060
    %v1124 = vpop.f32.mrf.mxu0
    %v1125 = vadd.f32 0.0, %v1124
    %1126 = vmatmul.f32.gmra.mxu0 %v1063
    %v1127 = vpop.f32.mrf.mxu0
    %v1128 = vadd.f32 0.0, %v1127
    %1129 = vmatmul.f32.gmra.mxu0 %v1066
    %v1130 = vpop.f32.mrf.mxu0
    %v1131 = vadd.f32 0.0, %v1130
    %1132 = vmatmul.f32.gmra.mxu0 %v1069
    %v1133 = vpop.f32.mrf.mxu0
    %v1134 = vadd.f32 0.0, %v1133
    %1135 = vmatmul.f32.gmra.mxu0 %v1072
    %v1136 = vpop.f32.mrf.mxu0
    %v1137 = vadd.f32 0.0, %v1136
    %1138 = vmatmul.f32.gmra.mxu0 %v1075
    %v1139 = vpop.f32.mrf.mxu0
    %v1140 = vadd.f32 0.0, %v1139
    %1141 = vmatmul.f32.gmra.mxu0 %v1078
    %v1142 = vpop.f32.mrf.mxu0
    %v1143 = vadd.f32 0.0, %v1142
    %1144 = vmatmul.f32.gmra.mxu0 %v1081
    %v1145 = vpop.f32.mrf.mxu0
    %v1146 = vadd.f32 0.0, %v1145
    %1147 = vmatmul.f32.gmra.mxu0 %v1084
    %v1148 = vpop.f32.mrf.mxu0
    %v1149 = vadd.f32 0.0, %v1148
    %1150 = vmatmul.f32.gmra.mxu0 %v1087
    %v1151 = vpop.f32.mrf.mxu0
    %v1152 = vadd.f32 0.0, %v1151
    %1153 = vmatmul.f32.gmra.mxu0 %v1090
    %v1154 = vpop.f32.mrf.mxu0
    %v1155 = vadd.f32 0.0, %v1154
    %1156 = vdwg.mxu0
    %v1157 = vadd.f32 %v937, %v1110
    %v1158 = vadd.f32 %v938, %v1113
    %v1159 = vadd.f32 %v939, %v1116
    %v1160 = vadd.f32 %v940, %v1119
    %v1161 = vadd.f32 %v941, %v1122
    %v1162 = vadd.f32 %v942, %v1125
    %v1163 = vadd.f32 %v943, %v1128
    %v1164 = vadd.f32 %v944, %v1131
    %v1165 = vadd.f32 %v945, %v1134
    %v1166 = vadd.f32 %v946, %v1137
    %v1167 = vadd.f32 %v947, %v1140
    %v1168 = vadd.f32 %v948, %v1143
    %v1169 = vadd.f32 %v949, %v1146
    %v1170 = vadd.f32 %v950, %v1149
    %v1171 = vadd.f32 %v951, %v1152
    %v1172 = vadd.f32 %v952, %v1155
    %1173 = vmatpush.msra.mxu0 0.0
    %1174 = vmatpush.msra.mxu0 0.0
    %1175 = vmatpush.msra.mxu0 0.0
    %1176 = vmatpush.msra.mxu0 0.0
    %1177 = vmatpush.msra.mxu0 0.0
    %1178 = vmatpush.msra.mxu0 0.0
    %1179 = vmatpush.msra.mxu0 0.0
    %1180 = vmatpush.msra.mxu0 0.0
    %1181 = vmatpush.msra.mxu0 %v1025
    %1182 = vmatpush.msra.mxu0 %v1022
    %1183 = vmatpush.msra.mxu0 %v1019
    %1184 = vmatpush.msra.mxu0 %v1016
    %1185 = vmatpush.msra.mxu0 %v1013
    %1186 = vmatpush.msra.mxu0 %v1010
    %1187 = vmatpush.msra.mxu0 %v1007
    %1188 = vmatpush.msra.mxu0 %v1004
    %1189 = vmatmul.f32.gmra.mxu0 %v963
    %v1190 = vpop.f32.mrf.mxu0
    %v1191 = vadd.f32 0.0, %v1190
    %1192 = vmatmul.f32.gmra.mxu0 %v966
    %v1193 = vpop.f32.mrf.mxu0
    %v1194 = vadd.f32 0.0, %v1193
    %1195 = vmatmul.f32.gmra.mxu0 %v969
    %v1196 = vpop.f32.mrf.mxu0
    %v1197 = vadd.f32 0.0, %v1196
    %1198 = vmatmul.f32.gmra.mxu0 %v972
    %v1199 = vpop.f32.mrf.mxu0
    %v1200 = vadd.f32 0.0, %v1199
    %1201 = vmatmul.f32.gmra.mxu0 %v975
    %v1202 = vpop.f32.mrf.mxu0
    %v1203 = vadd.f32 0.0, %v1202
    %1204 = vmatmul.f32.gmra.mxu0 %v978
    %v1205 = vpop.f32.mrf.mxu0
    %v1206 = vadd.f32 0.0, %v1205
    %1207 = vmatmul.f32.gmra.mxu0 %v981
    %v1208 = vpop.f32.mrf.mxu0
    %v1209 = vadd.f32 0.0, %v1208
    %1210 = vmatmul.f32.gmra.mxu0 %v984
    %v1211 = vpop.f32.mrf.mxu0
    %v1212 = vadd.f32 0.0, %v1211
    %1213 = vdwg.mxu0
    %s1214 = scalar_lea.vmem %s2, 768
    %v1215 = vld [vmem:[%s1214] sm:$0xff]
    %v1216 = vld [vmem:[%s1214 + $0x8] sm:$0xff]
    %v1217 = vld [vmem:[%s1214 + $0x10] sm:$0xff]
    %v1218 = vld [vmem:[%s1214 + $0x18] sm:$0xff]
    %v1219 = vld [vmem:[%s1214 + $0x20] sm:$0xff]
    %v1220 = vld [vmem:[%s1214 + $0x28] sm:$0xff]
    %v1221 = vld [vmem:[%s1214 + $0x30] sm:$0xff]
    %v1222 = vld [vmem:[%s1214 + $0x38] sm:$0xff]
    %v1223 = vld [vmem:[%s1214 + $0x40] sm:$0xff]
    %v1224 = vld [vmem:[%s1214 + $0x48] sm:$0xff]
    %v1225 = vld [vmem:[%s1214 + $0x50] sm:$0xff]
    %v1226 = vld [vmem:[%s1214 + $0x58] sm:$0xff]
    %v1227 = vld [vmem:[%s1214 + $0x60] sm:$0xff]
    %v1228 = vld [vmem:[%s1214 + $0x68] sm:$0xff]
    %v1229 = vld [vmem:[%s1214 + $0x70] sm:$0xff]
    %v1230 = vld [vmem:[%s1214 + $0x78] sm:$0xff]
    %v1232 = vsel %vm50, %v1215, 0
    %v1235 = vsel %vm50, %v1216, 0
    %v1238 = vsel %vm50, %v1217, 0
    %v1241 = vsel %vm50, %v1218, 0
    %v1244 = vsel %vm50, %v1219, 0
    %v1247 = vsel %vm50, %v1220, 0
    %v1250 = vsel %vm50, %v1221, 0
    %v1253 = vsel %vm50, %v1222, 0
    %v1256 = vsel %vm50, %v1223, 0
    %v1259 = vsel %vm50, %v1224, 0
    %v1262 = vsel %vm50, %v1225, 0
    %v1265 = vsel %vm50, %v1226, 0
    %v1268 = vsel %vm50, %v1227, 0
    %v1271 = vsel %vm50, %v1228, 0
    %v1274 = vsel %vm50, %v1229, 0
    %v1277 = vsel %vm50, %v1230, 0
    %1279 = vmatpush.msra.mxu0 0.0
    %1280 = vmatpush.msra.mxu0 0.0
    %1281 = vmatpush.msra.mxu0 0.0
    %1282 = vmatpush.msra.mxu0 0.0
    %1283 = vmatpush.msra.mxu0 0.0
    %1284 = vmatpush.msra.mxu0 0.0
    %1285 = vmatpush.msra.mxu0 0.0
    %1286 = vmatpush.msra.mxu0 0.0
    %1287 = vmatpush.msra.mxu0 %v1212
    %1288 = vmatpush.msra.mxu0 %v1209
    %1289 = vmatpush.msra.mxu0 %v1206
    %1290 = vmatpush.msra.mxu0 %v1203
    %1291 = vmatpush.msra.mxu0 %v1200
    %1292 = vmatpush.msra.mxu0 %v1197
    %1293 = vmatpush.msra.mxu0 %v1194
    %1294 = vmatpush.msra.mxu0 %v1191
    %1295 = vmatmul.f32.gmra.mxu0 %v1232
    %v1296 = vpop.f32.mrf.mxu0
    %v1297 = vadd.f32 0.0, %v1296
    %1298 = vmatmul.f32.gmra.mxu0 %v1235
    %v1299 = vpop.f32.mrf.mxu0
    %v1300 = vadd.f32 0.0, %v1299
    %1301 = vmatmul.f32.gmra.mxu0 %v1238
    %v1302 = vpop.f32.mrf.mxu0
    %v1303 = vadd.f32 0.0, %v1302
    %1304 = vmatmul.f32.gmra.mxu0 %v1241
    %v1305 = vpop.f32.mrf.mxu0
    %v1306 = vadd.f32 0.0, %v1305
    %1307 = vmatmul.f32.gmra.mxu0 %v1244
    %v1308 = vpop.f32.mrf.mxu0
    %v1309 = vadd.f32 0.0, %v1308
    %1310 = vmatmul.f32.gmra.mxu0 %v1247
    %v1311 = vpop.f32.mrf.mxu0
    %v1312 = vadd.f32 0.0, %v1311
    %1313 = vmatmul.f32.gmra.mxu0 %v1250
    %v1314 = vpop.f32.mrf.mxu0
    %v1315 = vadd.f32 0.0, %v1314
    %1316 = vmatmul.f32.gmra.mxu0 %v1253
    %v1317 = vpop.f32.mrf.mxu0
    %v1318 = vadd.f32 0.0, %v1317
    %1319 = vmatmul.f32.gmra.mxu0 %v1256
    %v1320 = vpop.f32.mrf.mxu0
    %v1321 = vadd.f32 0.0, %v1320
    %1322 = vmatmul.f32.gmra.mxu0 %v1259
    %v1323 = vpop.f32.mrf.mxu0
    %v1324 = vadd.f32 0.0, %v1323
    %1325 = vmatmul.f32.gmra.mxu0 %v1262
    %v1326 = vpop.f32.mrf.mxu0
    %v1327 = vadd.f32 0.0, %v1326
    %1328 = vmatmul.f32.gmra.mxu0 %v1265
    %v1329 = vpop.f32.mrf.mxu0
    %v1330 = vadd.f32 0.0, %v1329
    %1331 = vmatmul.f32.gmra.mxu0 %v1268
    %v1332 = vpop.f32.mrf.mxu0
    %v1333 = vadd.f32 0.0, %v1332
    %1334 = vmatmul.f32.gmra.mxu0 %v1271
    %v1335 = vpop.f32.mrf.mxu0
    %v1336 = vadd.f32 0.0, %v1335
    %1337 = vmatmul.f32.gmra.mxu0 %v1274
    %v1338 = vpop.f32.mrf.mxu0
    %v1339 = vadd.f32 0.0, %v1338
    %1340 = vmatmul.f32.gmra.mxu0 %v1277
    %v1341 = vpop.f32.mrf.mxu0
    %v1342 = vadd.f32 0.0, %v1341
    %1343 = vdwg.mxu0
    %v1344 = vadd.f32 %v1157, %v1297
    %v1345 = vadd.f32 %v1158, %v1300
    %v1346 = vadd.f32 %v1159, %v1303
    %v1347 = vadd.f32 %v1160, %v1306
    %v1348 = vadd.f32 %v1161, %v1309
    %v1349 = vadd.f32 %v1162, %v1312
    %v1350 = vadd.f32 %v1163, %v1315
    %v1351 = vadd.f32 %v1164, %v1318
    %v1352 = vadd.f32 %v1165, %v1321
    %v1353 = vadd.f32 %v1166, %v1324
    %v1354 = vadd.f32 %v1167, %v1327
    %v1355 = vadd.f32 %v1168, %v1330
    %v1356 = vadd.f32 %v1169, %v1333
    %v1357 = vadd.f32 %v1170, %v1336
    %v1358 = vadd.f32 %v1171, %v1339
    %v1359 = vadd.f32 %v1172, %v1342
    %v1360 = vld [vmem:[%s3] sm:$0xff]
    %v1361 = vld [vmem:[%s3 + $0x8] sm:$0xff]
    %v1362 = vld [vmem:[%s3 + $0x10] sm:$0xff]
    %v1363 = vld [vmem:[%s3 + $0x18] sm:$0xff]
    %v1364 = vld [vmem:[%s3 + $0x20] sm:$0xff]
    %v1365 = vld [vmem:[%s3 + $0x28] sm:$0xff]
    %v1366 = vld [vmem:[%s3 + $0x30] sm:$0xff]
    %v1367 = vld [vmem:[%s3 + $0x38] sm:$0xff]
    %v1368 = vld [vmem:[%s3 + $0x40] sm:$0xff]
    %v1369 = vld [vmem:[%s3 + $0x48] sm:$0xff]
    %v1370 = vld [vmem:[%s3 + $0x50] sm:$0xff]
    %v1371 = vld [vmem:[%s3 + $0x58] sm:$0xff]
    %v1372 = vld [vmem:[%s3 + $0x60] sm:$0xff]
    %v1373 = vld [vmem:[%s3 + $0x68] sm:$0xff]
    %v1374 = vld [vmem:[%s3 + $0x70] sm:$0xff]
    %v1375 = vld [vmem:[%s3 + $0x78] sm:$0xff]
    %1377 = vset.pattern.permute.xlu0 0
    %1378 = vperm.xlu0 %1377, %v1360
    %v1379 = vpop.permute.xlu0 %1378
    %1382 = vset.pattern.permute.xlu0 0
    %1383 = vperm.xlu0 %1382, %v1361
    %v1384 = vpop.permute.xlu0 %1383
    %1387 = vset.pattern.permute.xlu0 0
    %1388 = vperm.xlu0 %1387, %v1362
    %v1389 = vpop.permute.xlu0 %1388
    %1392 = vset.pattern.permute.xlu0 0
    %1393 = vperm.xlu0 %1392, %v1363
    %v1394 = vpop.permute.xlu0 %1393
    %1397 = vset.pattern.permute.xlu0 0
    %1398 = vperm.xlu0 %1397, %v1364
    %v1399 = vpop.permute.xlu0 %1398
    %1402 = vset.pattern.permute.xlu0 0
    %1403 = vperm.xlu0 %1402, %v1365
    %v1404 = vpop.permute.xlu0 %1403
    %1407 = vset.pattern.permute.xlu0 0
    %1408 = vperm.xlu0 %1407, %v1366
    %v1409 = vpop.permute.xlu0 %1408
    %1412 = vset.pattern.permute.xlu0 0
    %1413 = vperm.xlu0 %1412, %v1367
    %v1414 = vpop.permute.xlu0 %1413
    %1417 = vset.pattern.permute.xlu0 0
    %1418 = vperm.xlu0 %1417, %v1368
    %v1419 = vpop.permute.xlu0 %1418
    %1422 = vset.pattern.permute.xlu0 0
    %1423 = vperm.xlu0 %1422, %v1369
    %v1424 = vpop.permute.xlu0 %1423
    %1427 = vset.pattern.permute.xlu0 0
    %1428 = vperm.xlu0 %1427, %v1370
    %v1429 = vpop.permute.xlu0 %1428
    %1432 = vset.pattern.permute.xlu0 0
    %1433 = vperm.xlu0 %1432, %v1371
    %v1434 = vpop.permute.xlu0 %1433
    %1437 = vset.pattern.permute.xlu0 0
    %1438 = vperm.xlu0 %1437, %v1372
    %v1439 = vpop.permute.xlu0 %1438
    %1442 = vset.pattern.permute.xlu0 0
    %1443 = vperm.xlu0 %1442, %v1373
    %v1444 = vpop.permute.xlu0 %1443
    %1447 = vset.pattern.permute.xlu0 0
    %1448 = vperm.xlu0 %1447, %v1374
    %v1449 = vpop.permute.xlu0 %1448
    %1452 = vset.pattern.permute.xlu0 0
    %1453 = vperm.xlu0 %1452, %v1375
    %v1454 = vpop.permute.xlu0 %1453
    %v1456 = vadd.f32 %v1344, %v1379
    %v1457 = vadd.f32 %v1345, %v1384
    %v1458 = vadd.f32 %v1346, %v1389
    %v1459 = vadd.f32 %v1347, %v1394
    %v1460 = vadd.f32 %v1348, %v1399
    %v1461 = vadd.f32 %v1349, %v1404
    %v1462 = vadd.f32 %v1350, %v1409
    %v1463 = vadd.f32 %v1351, %v1414
    %v1464 = vadd.f32 %v1352, %v1419
    %v1465 = vadd.f32 %v1353, %v1424
    %v1466 = vadd.f32 %v1354, %v1429
    %v1467 = vadd.f32 %v1355, %v1434
    %v1468 = vadd.f32 %v1356, %v1439
    %v1469 = vadd.f32 %v1357, %v1444
    %v1470 = vadd.f32 %v1358, %v1449
    %v1471 = vadd.f32 %v1359, %v1454
    %1472 = vst [vmem:[#allocation2] sm:$0xff] %v1456
    %1473 = vst [vmem:[#allocation2 + $0x8] sm:$0xff] %v1457
    %1474 = vst [vmem:[#allocation2 + $0x10] sm:$0xff] %v1458
    %1475 = vst [vmem:[#allocation2 + $0x18] sm:$0xff] %v1459
    %1476 = vst [vmem:[#allocation2 + $0x20] sm:$0xff] %v1460
    %1477 = vst [vmem:[#allocation2 + $0x28] sm:$0xff] %v1461
    %1478 = vst [vmem:[#allocation2 + $0x30] sm:$0xff] %v1462
    %1479 = vst [vmem:[#allocation2 + $0x38] sm:$0xff] %v1463
    %1480 = vst [vmem:[#allocation2 + $0x40] sm:$0xff] %v1464
    %1481 = vst [vmem:[#allocation2 + $0x48] sm:$0xff] %v1465
    %1482 = vst [vmem:[#allocation2 + $0x50] sm:$0xff] %v1466
    %1483 = vst [vmem:[#allocation2 + $0x58] sm:$0xff] %v1467
    %1484 = vst [vmem:[#allocation2 + $0x60] sm:$0xff] %v1468
    %1485 = vst [vmem:[#allocation2 + $0x68] sm:$0xff] %v1469
    %1486 = vst [vmem:[#allocation2 + $0x70] sm:$0xff] %v1470
    %1487 = vst [vmem:[#allocation2 + $0x78] sm:$0xff] %v1471
    // Predicated region
    $region18: #{tpu_custom_call.1} parent=1 // pred_check
      _
    $region19: #{tpu_custom_call.1} parent=1 // pred_check_branch
      %1489 = sbr.rel (0) target = $region21
    $region20: #{tpu_custom_call.1} parent=1 // pred_region
      %1491 = vsyncadd [#allocation3], 0
      %s1492 = sshll.u32 [#allocation2], 4
      %s1493 = int_to_ptr.vmem [resolvable:$true] %s1492
      %s1494 = sshll.u32 %s4, 4
      %s1495 = int_to_ptr.hbm [resolvable:$true] %s1494
      %1500 = dma.vmem_to_hbm [thread:$0]  %s1493, 2048, %s1495, [#allocation3], 128, 128, 8
    $region21: #{tpu_custom_call.1} parent=1 // pred_fallthru
      _
    // Predicated region
    $region22: #{tpu_custom_call.1} parent=1 // pred_check
      _
    $region23: #{tpu_custom_call.1} parent=1 // pred_check_branch
      %1502 = sbr.rel (0) target = $region25
    $region24: #{tpu_custom_call.1} parent=1 // pred_region
      %1504 = dma.done [#allocation3], 2048
    $region25: #{tpu_custom_call.1} parent=1 // pred_fallthru
      _
    %1505 = vsyncpa [#allocation3], 1

</llo_original>
